<compile_context>
chip_gen: v5e
topology: v5e:2x2
jax: 0.10.0
libtpu: 0.0.40
codegen_flags: <defaults>
</compile_context>

<pallas_src>
import functools

import jax
import jax.numpy as jnp
from jax.experimental import pallas as pl
from jax.experimental.pallas import tpu as pltpu


def _ceil_to(x: int, m: int) -> int:
    return ((x + m - 1) // m) * m


def _ffn_kernel(x_ref, w1_ref, b1_ref, w2_ref, b2_ref, o_ref, acc_ref):
    k = pl.program_id(1)

    @pl.when(k == 0)
    def _():
        acc_ref[...] = jnp.zeros_like(acc_ref)

    # First matmul on one d_ff chunk: (tm, d_model) @ (d_model, tk) -> f32 acc.
    h = jnp.dot(x_ref[...], w1_ref[...], preferred_element_type=jnp.float32)
    h = h + b1_ref[...]
    h = jnp.maximum(h, 0.0)  # ReLU
    # TODO(synk): dropout omitted (inference / dropout=None path); a training
    # variant would use pltpu.prng_seed + pltpu.prng_random_bits here.
    h = h.astype(w2_ref.dtype)

    # Second matmul chunk contribution, accumulated in f32.
    acc_ref[...] += jnp.dot(h, w2_ref[...], preferred_element_type=jnp.float32)

    @pl.when(k == pl.num_programs(1) - 1)
    def _():
        o_ref[...] = (acc_ref[...] + b2_ref[...]).astype(o_ref.dtype)


def _vmem_footprint(tm, tk, d_model, itemsize, out_itemsize):
    """Approximate VMEM bytes for one pipeline configuration."""
    return (
        2 * tm * d_model * itemsize            # x row tile (double-buffered)
        + 2 * d_model * tk * itemsize          # W1 chunk
        + 2 * tk * d_model * itemsize          # W2 chunk
        + 2 * tm * d_model * out_itemsize      # out tile
        + tm * d_model * 4                     # f32 accumulator scratch
        + tm * tk * 4                          # f32 intermediate h
        + 2 * 2 * (tk + d_model) * 4           # biases (double-buffered)
    )


def _pick_tile_ff(d_ff, d_model, tm, itemsize, out_itemsize, budget_bytes):
    """Largest d_ff chunk (prefer the full d_ff -> weights stay VMEM-resident)."""
    cands = [d_ff]
    t = (d_ff // 128) * 128
    while t >= 128:
        if d_ff % t == 0 and t not in cands:
            cands.append(t)
        t -= 128
    for tk in cands:  # already ordered: full d_ff first, then descending chunks
        if _vmem_footprint(tm, tk, d_model, itemsize, out_itemsize) <= budget_bytes:
            return tk
    return cands[-1]  # smallest aligned chunk; let vmem_limit stretch


@functools.partial(jax.jit, static_argnames=("tile_m", "tile_ff", "compute_dtype"))
def feed_forward(x, w1, b1, w2, b2, *, tile_m=256, tile_ff=None, compute_dtype=None):
    """x: (batch, seq, d_model). Returns (batch, seq, d_model) in x.dtype."""
    batch, seq, d_model = x.shape
    d_ff = w1.shape[1]
    out_dtype = x.dtype
    out_itemsize = jnp.dtype(out_dtype).itemsize

    # Optional low-precision MXU operands (f32 accumulation inside the kernel).
    if compute_dtype is not None:
        x = x.astype(compute_dtype)
        w1 = w1.astype(compute_dtype)
        w2 = w2.astype(compute_dtype)
    b1 = b1.astype(jnp.float32)
    b2 = b2.astype(jnp.float32)

    M = batch * seq
    itemsize = jnp.dtype(x.dtype).itemsize
    pack = 16 if itemsize == 2 else 8            # sublane packing (bf16 vs f32)

    # Row tile: large by default, clamp for tiny inputs, keep it a multiple of
    # the sublane packing; pad M up to a tile multiple.
    tm = min(tile_m, _ceil_to(M, pack))
    tm = _ceil_to(tm, pack)
    m_pad = _ceil_to(M, tm)

    # d_ff chunk: auto-pick against VMEM budget (full d_ff => resident weights),
    # unless the caller forces a tile_ff.
    vmem_budget = 40 * 1024 * 1024               # conservative for v7x (64 MiB phys)
    if tile_ff is None:
        tk = _pick_tile_ff(d_ff, d_model, tm, itemsize, out_itemsize, vmem_budget)
    else:
        tk = min(tile_ff, d_ff)
    assert d_ff % tk == 0, "d_ff must be divisible by the d_ff tile"
    assert tk % 128 == 0 or tk == d_ff, "d_ff tile must be a multiple of 128"

    x2d = x.reshape(M, d_model)
    if m_pad != M:
        x2d = jnp.pad(x2d, ((0, m_pad - M), (0, 0)))
    b1_2d = b1.reshape(1, d_ff)
    b2_2d = b2.reshape(1, d_model)

    fp = _vmem_footprint(tm, tk, d_model, itemsize, out_itemsize)
    vmem_limit = int(min(max(int(1.25 * fp), 16 * 1024 * 1024), 60 * 1024 * 1024))

    cost = pl.CostEstimate(
        flops=4 * M * d_model * d_ff,            # two matmuls, 2 flops per MAC
        transcendentals=0,
        bytes_accessed=(
            x2d.size * itemsize
            + w1.size * itemsize + w2.size * itemsize
            + b1.size * 4 + b2.size * 4
            + m_pad * d_model * out_itemsize
        ),
    )

    out2d = pl.pallas_call(
        _ffn_kernel,
        out_shape=jax.ShapeDtypeStruct((m_pad, d_model), out_dtype),
        grid_spec=pltpu.PrefetchScalarGridSpec(
            num_scalar_prefetch=0,
            grid=(m_pad // tm, d_ff // tk),
            in_specs=[
                pl.BlockSpec((tm, d_model), lambda i, k: (i, 0)),   # x row tile
                pl.BlockSpec((d_model, tk), lambda i, k: (0, k)),   # W1 chunk
                pl.BlockSpec((1, tk), lambda i, k: (0, k)),         # b1 chunk
                pl.BlockSpec((tk, d_model), lambda i, k: (k, 0)),   # W2 chunk
                pl.BlockSpec((1, d_model), lambda i, k: (0, 0)),    # b2
            ],
            out_specs=pl.BlockSpec((tm, d_model), lambda i, k: (i, 0)),
            scratch_shapes=[pltpu.VMEM((tm, d_model), jnp.float32)],
        ),
        compiler_params=pltpu.CompilerParams(
            dimension_semantics=("parallel", "arbitrary"),
            vmem_limit_bytes=vmem_limit,
        ),
        cost_estimate=cost,
    )(x2d, w1, b1_2d, w2, b2_2d)

    if m_pad != M:
        out2d = out2d[:M]
    return out2d.reshape(batch, seq, d_model)


def init_params(key, d_model, d_ff, dtype=jnp.float32):
    """Deterministic init mimicking nn.Linear's uniform(-1/sqrt(fan_in), ...)."""
    k1, k2, k3, k4 = jax.random.split(key, 4)
    lim1 = 1.0 / (d_model ** 0.5)
    lim2 = 1.0 / (d_ff ** 0.5)
    w1 = jax.random.uniform(k1, (d_model, d_ff), dtype, -lim1, lim1)
    b1 = jax.random.uniform(k2, (d_ff,), dtype, -lim1, lim1)
    w2 = jax.random.uniform(k3, (d_ff, d_model), dtype, -lim2, lim2)
    b2 = jax.random.uniform(k4, (d_model,), dtype, -lim2, lim2)
    return w1, b1, w2, b2


if __name__ == "__main__":
    # Small shapes consistent with the module's (batch, seq, d_model) contract.
    batch, seq, d_model, d_ff = 2, 8, 128, 512

    key = jax.random.PRNGKey(0)
    kx, kp = jax.random.split(key)
    x = jax.random.normal(kx, (batch, seq, d_model), jnp.float32)
    w1, b1, w2, b2 = init_params(kp, d_model, d_ff)

    # Pure-JAX reference.
    ref = jnp.maximum(x @ w1 + b1, 0.0) @ w2 + b2

    # 1) Auto-tiled f32 path: weights fit in VMEM -> resident-weights fast path.
    out = feed_forward(x, w1, b1, w2, b2)
    out = jax.block_until_ready(out)
    assert out.shape == (batch, seq, d_model)
    assert jnp.allclose(out, ref, atol=1e-4, rtol=1e-4), "f32 auto-tiled mismatch"

    # 2) Forced d_ff chunking (tile_ff=256 -> two chunks) to exercise the
    #    reduction axis / accumulator path.
    out_chunked = feed_forward(x, w1, b1, w2, b2, tile_ff=256)
    out_chunked = jax.block_until_ready(out_chunked)
    assert jnp.allclose(out_chunked, ref, atol=1e-4, rtol=1e-4), "chunked mismatch"

    # 3) bf16 MXU-operand path (v6e/v7x fast path), f32 accumulation, f32 out.
    out_bf = feed_forward(x, w1, b1, w2, b2, tile_ff=256,
                          compute_dtype=jnp.bfloat16)
    out_bf = jax.block_until_ready(out_bf)
    assert out_bf.shape == (batch, seq, d_model) and out_bf.dtype == jnp.float32
    rel_err = jnp.max(jnp.abs(out_bf - ref)) / (jnp.max(jnp.abs(ref)) + 1e-6)
    assert rel_err < 5e-2, f"bf16 path rel_err too high: {rel_err}"

    print("KERNEL_OK")
</pallas_src>

<mosaic_0001>
module attributes {stable_mosaic.version = 11 : i64} {
  func.func @_ffn_kernel(%arg0: i32, %arg1: i32, %arg2: memref<16x128xf32, #tpu.memory_space<vmem>>, %arg3: memref<128x512xf32, #tpu.memory_space<vmem>>, %arg4: memref<1x512xf32, #tpu.memory_space<vmem>>, %arg5: memref<512x128xf32, #tpu.memory_space<vmem>>, %arg6: memref<1x128xf32, #tpu.memory_space<vmem>>, %arg7: memref<16x128xf32, #tpu.memory_space<vmem>>, %arg8: memref<16x128xf32, #tpu.memory_space<vmem>>) attributes {dimension_semantics = [#tpu.dimension_semantics<parallel>, #tpu.dimension_semantics<arbitrary>], iteration_bounds = array<i64: 1, 1>, scalar_prefetch = 0 : i64, scratch_operands = 1 : i64, tpu.core_type = #tpu.core_type<tc>, window_params = [{transform_indices = @transform_0, window_bounds = array<i64: 16, 128>}, {transform_indices = @transform_1, window_bounds = array<i64: 128, 512>}, {transform_indices = @transform_2, window_bounds = array<i64: 1, 512>}, {transform_indices = @transform_3, window_bounds = array<i64: 512, 128>}, {pipeline_mode = #tpu.pipeline_mode<synchronous>, transform_indices = @transform_4, window_bounds = array<i64: 1, 128>}, {transform_indices = @transform_5, window_bounds = array<i64: 16, 128>}]} {
    %c0_i32 = arith.constant 0 : i32
    %0 = arith.cmpi eq, %arg1, %c0_i32 : i32
    %1 = arith.extui %0 : i1 to i32
    %c0_i32_0 = arith.constant 0 : i32
    %2 = arith.cmpi ne, %1, %c0_i32_0 : i32
    scf.if %2 {
      %cst_16 = arith.constant 0.000000e+00 : f32
      %19 = vector.broadcast %cst_16 : f32 to vector<16x128xf32>
      %c0_17 = arith.constant 0 : index
      %c0_18 = arith.constant 0 : index
      %20 = vector.load %arg8[%c0_17, %c0_18] : memref<16x128xf32, #tpu.memory_space<vmem>>, vector<16x128xf32>
      tpu.vector_store %arg8[%c0_17, %c0_18], %19 {strides = array<i32>} : memref<16x128xf32, #tpu.memory_space<vmem>>, vector<16x128xf32>,
    } else {
    }
    %c0 = arith.constant 0 : index
    %c0_1 = arith.constant 0 : index
    %3 = vector.load %arg2[%c0, %c0_1] : memref<16x128xf32, #tpu.memory_space<vmem>>, vector<16x128xf32>
    %c0_2 = arith.constant 0 : index
    %c0_3 = arith.constant 0 : index
    %4 = vector.load %arg3[%c0_2, %c0_3] : memref<128x512xf32, #tpu.memory_space<vmem>>, vector<128x512xf32>
    %cst = arith.constant dense<0.000000e+00> : vector<16x512xf32>
    %5 = tpu.matmul %3, %4, %cst {dimension_numbers = #tpu.dot_dimension_numbers<[1], [0], [0], [1], [0, 0, 1, 1], [], []>} : vector<16x128xf32>, vector<128x512xf32>, vector<16x512xf32> -> vector<16x512xf32>
    %c0_4 = arith.constant 0 : index
    %c0_5 = arith.constant 0 : index
    %6 = vector.load %arg4[%c0_4, %c0_5] : memref<1x512xf32, #tpu.memory_space<vmem>>, vector<1x512xf32>
    %7 = vector.broadcast %6 : vector<1x512xf32> to vector<16x512xf32>
    %8 = arith.addf %5, %7 : vector<16x512xf32>
    %cst_6 = arith.constant 0.000000e+00 : f32
    %9 = vector.broadcast %cst_6 : f32 to vector<16x512xf32>
    %10 = arith.maximumf %8, %9 : vector<16x512xf32>
    %c0_7 = arith.constant 0 : index
    %c0_8 = arith.constant 0 : index
    %11 = vector.load %arg8[%c0_7, %c0_8] : memref<16x128xf32, #tpu.memory_space<vmem>>, vector<16x128xf32>
    %c0_9 = arith.constant 0 : index
    %c0_10 = arith.constant 0 : index
    %12 = vector.load %arg5[%c0_9, %c0_10] : memref<512x128xf32, #tpu.memory_space<vmem>>, vector<512x128xf32>
    %cst_11 = arith.constant dense<0.000000e+00> : vector<16x128xf32>
    %13 = tpu.matmul %10, %12, %cst_11 {dimension_numbers = #tpu.dot_dimension_numbers<[1], [0], [0], [1], [0, 0, 1, 1], [], []>} : vector<16x512xf32>, vector<512x128xf32>, vector<16x128xf32> -> vector<16x128xf32>
    %14 = arith.addf %11, %13 : vector<16x128xf32>
    %c0_12 = arith.constant 0 : index
    %c0_13 = arith.constant 0 : index
    %15 = vector.load %arg8[%c0_12, %c0_13] : memref<16x128xf32, #tpu.memory_space<vmem>>, vector<16x128xf32>
    tpu.vector_store %arg8[%c0_12, %c0_13], %14 {strides = array<i32>} : memref<16x128xf32, #tpu.memory_space<vmem>>, vector<16x128xf32>,
    %c0_i32_14 = arith.constant 0 : i32
    %16 = arith.cmpi eq, %arg1, %c0_i32_14 : i32
    %17 = arith.extui %16 : i1 to i32
    %c0_i32_15 = arith.constant 0 : i32
    %18 = arith.cmpi ne, %17, %c0_i32_15 : i32
    scf.if %18 {
      %c0_16 = arith.constant 0 : index
      %c0_17 = arith.constant 0 : index
      %19 = vector.load %arg8[%c0_16, %c0_17] : memref<16x128xf32, #tpu.memory_space<vmem>>, vector<16x128xf32>
      %c0_18 = arith.constant 0 : index
      %c0_19 = arith.constant 0 : index
      %20 = vector.load %arg6[%c0_18, %c0_19] : memref<1x128xf32, #tpu.memory_space<vmem>>, vector<1x128xf32>
      %21 = vector.broadcast %20 : vector<1x128xf32> to vector<16x128xf32>
      %22 = arith.addf %19, %21 : vector<16x128xf32>
      %c0_20 = arith.constant 0 : index
      %c0_21 = arith.constant 0 : index
      %23 = vector.load %arg7[%c0_20, %c0_21] : memref<16x128xf32, #tpu.memory_space<vmem>>, vector<16x128xf32>
      tpu.vector_store %arg7[%c0_20, %c0_21], %22 {strides = array<i32>} : memref<16x128xf32, #tpu.memory_space<vmem>>, vector<16x128xf32>,
    } else {
    }
    return
  }
  func.func @transform_0(%arg0: i32, %arg1: i32) -> (i32, i32) {
    %c0_i32 = arith.constant 0 : i32
    %c0_i32_0 = arith.constant 0 : i32
    return %arg0, %c0_i32 : i32, i32
  }
  func.func @transform_1(%arg0: i32, %arg1: i32) -> (i32, i32) {
    %c0_i32 = arith.constant 0 : i32
    %c0_i32_0 = arith.constant 0 : i32
    return %c0_i32, %arg1 : i32, i32
  }
  func.func @transform_2(%arg0: i32, %arg1: i32) -> (i32, i32) {
    %c0_i32 = arith.constant 0 : i32
    %c0_i32_0 = arith.constant 0 : i32
    return %c0_i32, %arg1 : i32, i32
  }
  func.func @transform_3(%arg0: i32, %arg1: i32) -> (i32, i32) {
    %c0_i32 = arith.constant 0 : i32
    %c0_i32_0 = arith.constant 0 : i32
    return %arg1, %c0_i32 : i32, i32
  }
  func.func @transform_4(%arg0: i32, %arg1: i32) -> (i32, i32) {
    %c0_i32 = arith.constant 0 : i32
    %c0_i32_0 = arith.constant 0 : i32
    %c0_i32_1 = arith.constant 0 : i32
    return %c0_i32, %c0_i32_0 : i32, i32
  }
  func.func @transform_5(%arg0: i32, %arg1: i32) -> (i32, i32) {
    %c0_i32 = arith.constant 0 : i32
    %c0_i32_0 = arith.constant 0 : i32
    return %arg0, %c0_i32 : i32, i32
  }
}

</mosaic_0001>

<llo_original>
// kernel: feed_forward.1
$region0: #{feed_forward.1}
  #allocation0 [shape = 'u32[]', space=smem, size = 0x4, offset = 0x4, fixed_abs, tag = 'smem constant byte address 0x4 - core index']
  #allocation1 [shape = 'u32[72,128]{1,0:T(1,128)}', space=vmem, size = 0x9000, scoped, tag = 'internal scratch']
  #allocation2 [shape = 'f32[16,128]{1,0:T(8,128)}', space=vmem, size = 0x2000, scoped, tag = 'scratch operand']
  %s0 = inlined_call_operand.hbm [shape: f32[16,128], index: 0, kind: input, shape index: {}]
  %s1 = inlined_call_operand.hbm [shape: f32[128,512], index: 1, kind: input, shape index: {}]
  %s2 = inlined_call_operand.vmem [shape: f32[1,512], index: 2, kind: input, shape index: {}]
  %s3 = inlined_call_operand.hbm [shape: f32[512,128], index: 3, kind: input, shape index: {}]
  %s4 = inlined_call_operand.vmem [shape: f32[1,128], index: 4, kind: input, shape index: {}]
  %s5 = inlined_call_operand.hbm [shape: f32[16,128], index: 5, kind: output, shape index: {}]
  %s6 = sld [smem:[#allocation0]]
  $region50: #{feed_forward.1} parent=0
    _
  %s8 = ssub.s32 1, %s6
  %s9 = scalar_select 0, %s8, %s6
  $region1: #{feed_forward.1} parent=0
    #allocation3 [shape = 'u8[8192]{0}', space=vmem, size = 0x2000, scoped, tag = 'input window, operand 0, single buffered']
    #allocation4 [shape = 's32[1]{0}', space=sflag, size = 0x4, scoped, tag = 'scoped memory for feed_forward.1']
    #allocation5 [shape = 's32[1]{0}', space=sflag, size = 0x4, scoped, tag = 'scoped memory for feed_forward.1']
    #allocation6 [shape = 'u8[262144]{0}', space=vmem, size = 0x40000, scoped, tag = 'input window, operand 1, single buffered']
    #allocation7 [shape = 's32[1]{0}', space=sflag, size = 0x4, scoped, tag = 'scoped memory for feed_forward.1']
    #allocation8 [shape = 'u8[262144]{0}', space=vmem, size = 0x40000, scoped, tag = 'input window, operand 3, single buffered']
    #allocation9 [shape = 'u8[8192]{0}', space=vmem, size = 0x2000, scoped, tag = 'output window, operand 0, single buffered']
    %10 = vsyncpa [#allocation4], 0
    %11 = vsyncpa [#allocation7], 0
    %12 = vsyncpa [#allocation5], 0
    // Predicated region
    $region2: #{feed_forward.1} parent=1 // pred_check
      _
    $region3: #{feed_forward.1} parent=1 // pred_check_branch
      %14 = sbr.rel (0) target = $region5
    $region4: #{feed_forward.1} parent=1 // pred_region
      %16 = vsyncadd [#allocation4], 0
      %s17 = sshll.u32 %s0, 4
      %s18 = int_to_ptr.hbm [resolvable:$true] %s17
      %s19 = sshll.u32 [#allocation3], 4
      %s20 = int_to_ptr.vmem [resolvable:$true] %s19
      %25 = dma.hbm_to_vmem [thread:$0]  %s18, 256, %s20, [#allocation4], 128, 128, 8
    $region5: #{feed_forward.1} parent=1 // pred_fallthru
      _
    // Predicated region
    $region6: #{feed_forward.1} parent=1 // pred_check
      _
    $region7: #{feed_forward.1} parent=1 // pred_check_branch
      %27 = sbr.rel (0) target = $region9
    $region8: #{feed_forward.1} parent=1 // pred_region
      %29 = vsyncadd [#allocation7], 0
      %s30 = sshll.u32 %s1, 4
      %s31 = int_to_ptr.hbm [resolvable:$true] %s30
      %s32 = sshll.u32 [#allocation6], 4
      %s33 = int_to_ptr.vmem [resolvable:$true] %s32
      %38 = dma.hbm_to_vmem [thread:$0]  %s31, 8192, %s33, [#allocation7], 512, 512, 32
    $region9: #{feed_forward.1} parent=1 // pred_fallthru
      _
    // Predicated region
    $region10: #{feed_forward.1} parent=1 // pred_check
      _
    $region11: #{feed_forward.1} parent=1 // pred_check_branch
      %40 = sbr.rel (0) target = $region13
    $region12: #{feed_forward.1} parent=1 // pred_region
      _
    $region13: #{feed_forward.1} parent=1 // pred_fallthru
      _
    // Predicated region
    $region14: #{feed_forward.1} parent=1 // pred_check
      _
    $region15: #{feed_forward.1} parent=1 // pred_check_branch
      %42 = sbr.rel (0) target = $region17
    $region16: #{feed_forward.1} parent=1 // pred_region
      %44 = vsyncadd [#allocation7], 0
      %s45 = sshll.u32 %s3, 4
      %s46 = int_to_ptr.hbm [resolvable:$true] %s45
      %s47 = sshll.u32 [#allocation8], 4
      %s48 = int_to_ptr.vmem [resolvable:$true] %s47
      %53 = dma.hbm_to_vmem [thread:$0]  %s46, 8192, %s48, [#allocation7], 128, 128, 8
    $region17: #{feed_forward.1} parent=1 // pred_fallthru
      _
    // Predicated region
    $region18: #{feed_forward.1} parent=1 // pred_check
      _
    $region19: #{feed_forward.1} parent=1 // pred_check_branch
      %55 = sbr.rel (0) target = $region21
    $region20: #{feed_forward.1} parent=1 // pred_region
      _
    $region21: #{feed_forward.1} parent=1 // pred_fallthru
      _
    // Predicated region
    $region22: #{feed_forward.1} parent=1 // pred_check
      _
    $region23: #{feed_forward.1} parent=1 // pred_check_branch
      %57 = sbr.rel (0) target = $region25
    $region24: #{feed_forward.1} parent=1 // pred_region
      %59 = dma.done [#allocation4], 256
    $region25: #{feed_forward.1} parent=1 // pred_fallthru
      _
    // Predicated region
    $region26: #{feed_forward.1} parent=1 // pred_check
      _
    $region27: #{feed_forward.1} parent=1 // pred_check_branch
      %61 = sbr.rel (0) target = $region29
    $region28: #{feed_forward.1} parent=1 // pred_region
      %63 = dma.done [#allocation7], 8192
    $region29: #{feed_forward.1} parent=1 // pred_fallthru
      _
    // Predicated region
    $region30: #{feed_forward.1} parent=1 // pred_check
      _
    $region31: #{feed_forward.1} parent=1 // pred_check_branch
      %65 = sbr.rel (0) target = $region33
    $region32: #{feed_forward.1} parent=1 // pred_region
      %67 = dma.done [#allocation7], 8192
    $region33: #{feed_forward.1} parent=1 // pred_fallthru
      _
    %p68 = scmp.eq.s32.totalorder 0, 0
    // Predicated region
    $region34: #{feed_forward.1} parent=1 // pred_check
      %p69 = pneg %p68
    $region35: #{feed_forward.1} parent=1 // pred_check_branch
      %71 = sbr.rel (%p69) target = $region37
    $region36: #{feed_forward.1} parent=1 // pred_region
      %72 = vst [vmem:[#allocation2] sm:$0xff] 0.0
      %73 = vst [vmem:[#allocation2 + $0x8] sm:$0xff] 0.0
    $region37: #{feed_forward.1} parent=1 // pred_fallthru
      _
    %v74 = vld [vmem:[#allocation3] sm:$0xff]
    %v75 = vld [vmem:[#allocation3 + $0x8] sm:$0xff]
    %v76 = vld [vmem:[#allocation6] sm:$0xff]
    %v77 = vld [vmem:[#allocation6 + $0x8] sm:$0xff]
    %v78 = vld [vmem:[#allocation6 + $0x10] sm:$0xff]
    %v79 = vld [vmem:[#allocation6 + $0x18] sm:$0xff]
    %v80 = vld [vmem:[#allocation6 + $0x20] sm:$0xff]
    %v81 = vld [vmem:[#allocation6 + $0x28] sm:$0xff]
    %v82 = vld [vmem:[#allocation6 + $0x30] sm:$0xff]
    %v83 = vld [vmem:[#allocation6 + $0x38] sm:$0xff]
    %v84 = vld [vmem:[#allocation6 + $0x40] sm:$0xff]
    %v85 = vld [vmem:[#allocation6 + $0x48] sm:$0xff]
    %v86 = vld [vmem:[#allocation6 + $0x50] sm:$0xff]
    %v87 = vld [vmem:[#allocation6 + $0x58] sm:$0xff]
    %v88 = vld [vmem:[#allocation6 + $0x60] sm:$0xff]
    %v89 = vld [vmem:[#allocation6 + $0x68] sm:$0xff]
    %v90 = vld [vmem:[#allocation6 + $0x70] sm:$0xff]
    %v91 = vld [vmem:[#allocation6 + $0x78] sm:$0xff]
    %v92 = vld [vmem:[#allocation6 + $0x80] sm:$0xff]
    %v93 = vld [vmem:[#allocation6 + $0x88] sm:$0xff]
    %v94 = vld [vmem:[#allocation6 + $0x90] sm:$0xff]
    %v95 = vld [vmem:[#allocation6 + $0x98] sm:$0xff]
    %v96 = vld [vmem:[#allocation6 + $0xa0] sm:$0xff]
    %v97 = vld [vmem:[#allocation6 + $0xa8] sm:$0xff]
    %v98 = vld [vmem:[#allocation6 + $0xb0] sm:$0xff]
    %v99 = vld [vmem:[#allocation6 + $0xb8] sm:$0xff]
    %v100 = vld [vmem:[#allocation6 + $0xc0] sm:$0xff]
    %v101 = vld [vmem:[#allocation6 + $0xc8] sm:$0xff]
    %v102 = vld [vmem:[#allocation6 + $0xd0] sm:$0xff]
    %v103 = vld [vmem:[#allocation6 + $0xd8] sm:$0xff]
    %v104 = vld [vmem:[#allocation6 + $0xe0] sm:$0xff]
    %v105 = vld [vmem:[#allocation6 + $0xe8] sm:$0xff]
    %v106 = vld [vmem:[#allocation6 + $0xf0] sm:$0xff]
    %v107 = vld [vmem:[#allocation6 + $0xf8] sm:$0xff]
    %v108 = vld [vmem:[#allocation6 + $0x100] sm:$0xff]
    %v109 = vld [vmem:[#allocation6 + $0x108] sm:$0xff]
    %v110 = vld [vmem:[#allocation6 + $0x110] sm:$0xff]
    %v111 = vld [vmem:[#allocation6 + $0x118] sm:$0xff]
    %v112 = vld [vmem:[#allocation6 + $0x120] sm:$0xff]
    %v113 = vld [vmem:[#allocation6 + $0x128] sm:$0xff]
    %v114 = vld [vmem:[#allocation6 + $0x130] sm:$0xff]
    %v115 = vld [vmem:[#allocation6 + $0x138] sm:$0xff]
    %v116 = vld [vmem:[#allocation6 + $0x140] sm:$0xff]
    %v117 = vld [vmem:[#allocation6 + $0x148] sm:$0xff]
    %v118 = vld [vmem:[#allocation6 + $0x150] sm:$0xff]
    %v119 = vld [vmem:[#allocation6 + $0x158] sm:$0xff]
    %v120 = vld [vmem:[#allocation6 + $0x160] sm:$0xff]
    %v121 = vld [vmem:[#allocation6 + $0x168] sm:$0xff]
    %v122 = vld [vmem:[#allocation6 + $0x170] sm:$0xff]
    %v123 = vld [vmem:[#allocation6 + $0x178] sm:$0xff]
    %v124 = vld [vmem:[#allocation6 + $0x180] sm:$0xff]
    %v125 = vld [vmem:[#allocation6 + $0x188] sm:$0xff]
    %v126 = vld [vmem:[#allocation6 + $0x190] sm:$0xff]
    %v127 = vld [vmem:[#allocation6 + $0x198] sm:$0xff]
    %v128 = vld [vmem:[#allocation6 + $0x1a0] sm:$0xff]
    %v129 = vld [vmem:[#allocation6 + $0x1a8] sm:$0xff]
    %v130 = vld [vmem:[#allocation6 + $0x1b0] sm:$0xff]
    %v131 = vld [vmem:[#allocation6 + $0x1b8] sm:$0xff]
    %v132 = vld [vmem:[#allocation6 + $0x1c0] sm:$0xff]
    %v133 = vld [vmem:[#allocation6 + $0x1c8] sm:$0xff]
    %v134 = vld [vmem:[#allocation6 + $0x1d0] sm:$0xff]
    %v135 = vld [vmem:[#allocation6 + $0x1d8] sm:$0xff]
    %v136 = vld [vmem:[#allocation6 + $0x1e0] sm:$0xff]
    %v137 = vld [vmem:[#allocation6 + $0x1e8] sm:$0xff]
    %v138 = vld [vmem:[#allocation6 + $0x1f0] sm:$0xff]
    %v139 = vld [vmem:[#allocation6 + $0x1f8] sm:$0xff]
    %v140 = vld [vmem:[%s2] sm:$0xf]
    %v142 = vperm.slane %v140, 0
    %v143 = vperm.slane %v140, 1
    %v144 = vperm.slane %v140, 2
    %v145 = vperm.slane %v140, 3
    %150 = vmatpush.msra.mxu0 %v136
    %151 = vmatpush.msra.mxu0 %v132
    %152 = vmatpush.msra.mxu0 %v128
    %153 = vmatpush.msra.mxu0 %v124
    %154 = vmatpush.msra.mxu0 %v120
    %155 = vmatpush.msra.mxu0 %v116
    %156 = vmatpush.msra.mxu0 %v112
    %157 = vmatpush.msra.mxu0 %v108
    %158 = vmatpush.msra.mxu0 %v104
    %159 = vmatpush.msra.mxu0 %v100
    %160 = vmatpush.msra.mxu0 %v96
    %161 = vmatpush.msra.mxu0 %v92
    %162 = vmatpush.msra.mxu0 %v88
    %163 = vmatpush.msra.mxu0 %v84
    %164 = vmatpush.msra.mxu0 %v80
    %165 = vmatpush.msra.mxu0 %v76
    %166 = vmatmul.f32.gmra.mxu0 %v74
    %v167 = vpop.f32.mrf.mxu0
    %v168 = vadd.f32 %v142, %v167
    %169 = vmatmul.f32.gmra.mxu0 %v75
    %v170 = vpop.f32.mrf.mxu0
    %v171 = vadd.f32 %v142, %v170
    %172 = vdwg.mxu0
    %173 = vmatpush.msra.mxu0 %v137
    %174 = vmatpush.msra.mxu0 %v133
    %175 = vmatpush.msra.mxu0 %v129
    %176 = vmatpush.msra.mxu0 %v125
    %177 = vmatpush.msra.mxu0 %v121
    %178 = vmatpush.msra.mxu0 %v117
    %179 = vmatpush.msra.mxu0 %v113
    %180 = vmatpush.msra.mxu0 %v109
    %181 = vmatpush.msra.mxu0 %v105
    %182 = vmatpush.msra.mxu0 %v101
    %183 = vmatpush.msra.mxu0 %v97
    %184 = vmatpush.msra.mxu0 %v93
    %185 = vmatpush.msra.mxu0 %v89
    %186 = vmatpush.msra.mxu0 %v85
    %187 = vmatpush.msra.mxu0 %v81
    %188 = vmatpush.msra.mxu0 %v77
    %189 = vmatmul.f32.gmra.mxu0 %v74
    %v190 = vpop.f32.mrf.mxu0
    %v191 = vadd.f32 %v143, %v190
    %192 = vmatmul.f32.gmra.mxu0 %v75
    %v193 = vpop.f32.mrf.mxu0
    %v194 = vadd.f32 %v143, %v193
    %195 = vdwg.mxu0
    %196 = vmatpush.msra.mxu0 %v138
    %197 = vmatpush.msra.mxu0 %v134
    %198 = vmatpush.msra.mxu0 %v130
    %199 = vmatpush.msra.mxu0 %v126
    %200 = vmatpush.msra.mxu0 %v122
    %201 = vmatpush.msra.mxu0 %v118
    %202 = vmatpush.msra.mxu0 %v114
    %203 = vmatpush.msra.mxu0 %v110
    %204 = vmatpush.msra.mxu0 %v106
    %205 = vmatpush.msra.mxu0 %v102
    %206 = vmatpush.msra.mxu0 %v98
    %207 = vmatpush.msra.mxu0 %v94
    %208 = vmatpush.msra.mxu0 %v90
    %209 = vmatpush.msra.mxu0 %v86
    %210 = vmatpush.msra.mxu0 %v82
    %211 = vmatpush.msra.mxu0 %v78
    %212 = vmatmul.f32.gmra.mxu0 %v74
    %v213 = vpop.f32.mrf.mxu0
    %v214 = vadd.f32 %v144, %v213
    %215 = vmatmul.f32.gmra.mxu0 %v75
    %v216 = vpop.f32.mrf.mxu0
    %v217 = vadd.f32 %v144, %v216
    %218 = vdwg.mxu0
    %219 = vmatpush.msra.mxu0 %v139
    %220 = vmatpush.msra.mxu0 %v135
    %221 = vmatpush.msra.mxu0 %v131
    %222 = vmatpush.msra.mxu0 %v127
    %223 = vmatpush.msra.mxu0 %v123
    %224 = vmatpush.msra.mxu0 %v119
    %225 = vmatpush.msra.mxu0 %v115
    %226 = vmatpush.msra.mxu0 %v111
    %227 = vmatpush.msra.mxu0 %v107
    %228 = vmatpush.msra.mxu0 %v103
    %229 = vmatpush.msra.mxu0 %v99
    %230 = vmatpush.msra.mxu0 %v95
    %231 = vmatpush.msra.mxu0 %v91
    %232 = vmatpush.msra.mxu0 %v87
    %233 = vmatpush.msra.mxu0 %v83
    %234 = vmatpush.msra.mxu0 %v79
    %235 = vmatmul.f32.gmra.mxu0 %v74
    %v236 = vpop.f32.mrf.mxu0
    %v237 = vadd.f32 %v145, %v236
    %238 = vmatmul.f32.gmra.mxu0 %v75
    %v239 = vpop.f32.mrf.mxu0
    %v240 = vadd.f32 %v145, %v239
    %241 = vdwg.mxu0
    %v242 = vmax.f32 %v168, 0.0
    %v243 = vmax.f32 %v191, 0.0
    %v244 = vmax.f32 %v214, 0.0
    %v245 = vmax.f32 %v237, 0.0
    %v246 = vmax.f32 %v171, 0.0
    %v247 = vmax.f32 %v194, 0.0
    %v248 = vmax.f32 %v217, 0.0
    %v249 = vmax.f32 %v240, 0.0
    %v250 = vld [vmem:[#allocation2] sm:$0xff]
    %v251 = vld [vmem:[#allocation2 + $0x8] sm:$0xff]
    %v252 = vld [vmem:[#allocation8] sm:$0xff]
    %v253 = vld [vmem:[#allocation8 + $0x8] sm:$0xff]
    %v254 = vld [vmem:[#allocation8 + $0x10] sm:$0xff]
    %v255 = vld [vmem:[#allocation8 + $0x18] sm:$0xff]
    %v256 = vld [vmem:[#allocation8 + $0x20] sm:$0xff]
    %v257 = vld [vmem:[#allocation8 + $0x28] sm:$0xff]
    %v258 = vld [vmem:[#allocation8 + $0x30] sm:$0xff]
    %v259 = vld [vmem:[#allocation8 + $0x38] sm:$0xff]
    %v260 = vld [vmem:[#allocation8 + $0x40] sm:$0xff]
    %v261 = vld [vmem:[#allocation8 + $0x48] sm:$0xff]
    %v262 = vld [vmem:[#allocation8 + $0x50] sm:$0xff]
    %v263 = vld [vmem:[#allocation8 + $0x58] sm:$0xff]
    %v264 = vld [vmem:[#allocation8 + $0x60] sm:$0xff]
    %v265 = vld [vmem:[#allocation8 + $0x68] sm:$0xff]
    %v266 = vld [vmem:[#allocation8 + $0x70] sm:$0xff]
    %v267 = vld [vmem:[#allocation8 + $0x78] sm:$0xff]
    %v268 = vld [vmem:[#allocation8 + $0x80] sm:$0xff]
    %v269 = vld [vmem:[#allocation8 + $0x88] sm:$0xff]
    %v270 = vld [vmem:[#allocation8 + $0x90] sm:$0xff]
    %v271 = vld [vmem:[#allocation8 + $0x98] sm:$0xff]
    %v272 = vld [vmem:[#allocation8 + $0xa0] sm:$0xff]
    %v273 = vld [vmem:[#allocation8 + $0xa8] sm:$0xff]
    %v274 = vld [vmem:[#allocation8 + $0xb0] sm:$0xff]
    %v275 = vld [vmem:[#allocation8 + $0xb8] sm:$0xff]
    %v276 = vld [vmem:[#allocation8 + $0xc0] sm:$0xff]
    %v277 = vld [vmem:[#allocation8 + $0xc8] sm:$0xff]
    %v278 = vld [vmem:[#allocation8 + $0xd0] sm:$0xff]
    %v279 = vld [vmem:[#allocation8 + $0xd8] sm:$0xff]
    %v280 = vld [vmem:[#allocation8 + $0xe0] sm:$0xff]
    %v281 = vld [vmem:[#allocation8 + $0xe8] sm:$0xff]
    %v282 = vld [vmem:[#allocation8 + $0xf0] sm:$0xff]
    %v283 = vld [vmem:[#allocation8 + $0xf8] sm:$0xff]
    %v284 = vld [vmem:[#allocation8 + $0x100] sm:$0xff]
    %v285 = vld [vmem:[#allocation8 + $0x108] sm:$0xff]
    %v286 = vld [vmem:[#allocation8 + $0x110] sm:$0xff]
    %v287 = vld [vmem:[#allocation8 + $0x118] sm:$0xff]
    %v288 = vld [vmem:[#allocation8 + $0x120] sm:$0xff]
    %v289 = vld [vmem:[#allocation8 + $0x128] sm:$0xff]
    %v290 = vld [vmem:[#allocation8 + $0x130] sm:$0xff]
    %v291 = vld [vmem:[#allocation8 + $0x138] sm:$0xff]
    %v292 = vld [vmem:[#allocation8 + $0x140] sm:$0xff]
    %v293 = vld [vmem:[#allocation8 + $0x148] sm:$0xff]
    %v294 = vld [vmem:[#allocation8 + $0x150] sm:$0xff]
    %v295 = vld [vmem:[#allocation8 + $0x158] sm:$0xff]
    %v296 = vld [vmem:[#allocation8 + $0x160] sm:$0xff]
    %v297 = vld [vmem:[#allocation8 + $0x168] sm:$0xff]
    %v298 = vld [vmem:[#allocation8 + $0x170] sm:$0xff]
    %v299 = vld [vmem:[#allocation8 + $0x178] sm:$0xff]
    %v300 = vld [vmem:[#allocation8 + $0x180] sm:$0xff]
    %v301 = vld [vmem:[#allocation8 + $0x188] sm:$0xff]
    %v302 = vld [vmem:[#allocation8 + $0x190] sm:$0xff]
    %v303 = vld [vmem:[#allocation8 + $0x198] sm:$0xff]
    %v304 = vld [vmem:[#allocation8 + $0x1a0] sm:$0xff]
    %v305 = vld [vmem:[#allocation8 + $0x1a8] sm:$0xff]
    %v306 = vld [vmem:[#allocation8 + $0x1b0] sm:$0xff]
    %v307 = vld [vmem:[#allocation8 + $0x1b8] sm:$0xff]
    %v308 = vld [vmem:[#allocation8 + $0x1c0] sm:$0xff]
    %v309 = vld [vmem:[#allocation8 + $0x1c8] sm:$0xff]
    %v310 = vld [vmem:[#allocation8 + $0x1d0] sm:$0xff]
    %v311 = vld [vmem:[#allocation8 + $0x1d8] sm:$0xff]
    %v312 = vld [vmem:[#allocation8 + $0x1e0] sm:$0xff]
    %v313 = vld [vmem:[#allocation8 + $0x1e8] sm:$0xff]
    %v314 = vld [vmem:[#allocation8 + $0x1f0] sm:$0xff]
    %v315 = vld [vmem:[#allocation8 + $0x1f8] sm:$0xff]
    %316 = vmatpush.msra.mxu0 %v267
    %317 = vmatpush.msra.mxu0 %v266
    %318 = vmatpush.msra.mxu0 %v265
    %319 = vmatpush.msra.mxu0 %v264
    %320 = vmatpush.msra.mxu0 %v263
    %321 = vmatpush.msra.mxu0 %v262
    %322 = vmatpush.msra.mxu0 %v261
    %323 = vmatpush.msra.mxu0 %v260
    %324 = vmatpush.msra.mxu0 %v259
    %325 = vmatpush.msra.mxu0 %v258
    %326 = vmatpush.msra.mxu0 %v257
    %327 = vmatpush.msra.mxu0 %v256
    %328 = vmatpush.msra.mxu0 %v255
    %329 = vmatpush.msra.mxu0 %v254
    %330 = vmatpush.msra.mxu0 %v253
    %331 = vmatpush.msra.mxu0 %v252
    %332 = vmatmul.f32.gmra.mxu0 %v242
    %v333 = vpop.f32.mrf.mxu0
    %v334 = vadd.f32 0.0, %v333
    %335 = vmatmul.f32.gmra.mxu0 %v246
    %v336 = vpop.f32.mrf.mxu0
    %v337 = vadd.f32 0.0, %v336
    %338 = vdwg.mxu0
    %339 = vmatpush.msra.mxu0 %v283
    %340 = vmatpush.msra.mxu0 %v282
    %341 = vmatpush.msra.mxu0 %v281
    %342 = vmatpush.msra.mxu0 %v280
    %343 = vmatpush.msra.mxu0 %v279
    %344 = vmatpush.msra.mxu0 %v278
    %345 = vmatpush.msra.mxu0 %v277
    %346 = vmatpush.msra.mxu0 %v276
    %347 = vmatpush.msra.mxu0 %v275
    %348 = vmatpush.msra.mxu0 %v274
    %349 = vmatpush.msra.mxu0 %v273
    %350 = vmatpush.msra.mxu0 %v272
    %351 = vmatpush.msra.mxu0 %v271
    %352 = vmatpush.msra.mxu0 %v270
    %353 = vmatpush.msra.mxu0 %v269
    %354 = vmatpush.msra.mxu0 %v268
    %355 = vmatmul.f32.gmra.mxu0 %v243
    %v356 = vpop.f32.mrf.mxu0
    %v357 = vadd.f32 %v334, %v356
    %358 = vmatmul.f32.gmra.mxu0 %v247
    %v359 = vpop.f32.mrf.mxu0
    %v360 = vadd.f32 %v337, %v359
    %361 = vdwg.mxu0
    %362 = vmatpush.msra.mxu0 %v299
    %363 = vmatpush.msra.mxu0 %v298
    %364 = vmatpush.msra.mxu0 %v297
    %365 = vmatpush.msra.mxu0 %v296
    %366 = vmatpush.msra.mxu0 %v295
    %367 = vmatpush.msra.mxu0 %v294
    %368 = vmatpush.msra.mxu0 %v293
    %369 = vmatpush.msra.mxu0 %v292
    %370 = vmatpush.msra.mxu0 %v291
    %371 = vmatpush.msra.mxu0 %v290
    %372 = vmatpush.msra.mxu0 %v289
    %373 = vmatpush.msra.mxu0 %v288
    %374 = vmatpush.msra.mxu0 %v287
    %375 = vmatpush.msra.mxu0 %v286
    %376 = vmatpush.msra.mxu0 %v285
    %377 = vmatpush.msra.mxu0 %v284
    %378 = vmatmul.f32.gmra.mxu0 %v244
    %v379 = vpop.f32.mrf.mxu0
    %v380 = vadd.f32 %v357, %v379
    %381 = vmatmul.f32.gmra.mxu0 %v248
    %v382 = vpop.f32.mrf.mxu0
    %v383 = vadd.f32 %v360, %v382
    %384 = vdwg.mxu0
    %385 = vmatpush.msra.mxu0 %v315
    %386 = vmatpush.msra.mxu0 %v314
    %387 = vmatpush.msra.mxu0 %v313
    %388 = vmatpush.msra.mxu0 %v312
    %389 = vmatpush.msra.mxu0 %v311
    %390 = vmatpush.msra.mxu0 %v310
    %391 = vmatpush.msra.mxu0 %v309
    %392 = vmatpush.msra.mxu0 %v308
    %393 = vmatpush.msra.mxu0 %v307
    %394 = vmatpush.msra.mxu0 %v306
    %395 = vmatpush.msra.mxu0 %v305
    %396 = vmatpush.msra.mxu0 %v304
    %397 = vmatpush.msra.mxu0 %v303
    %398 = vmatpush.msra.mxu0 %v302
    %399 = vmatpush.msra.mxu0 %v301
    %400 = vmatpush.msra.mxu0 %v300
    %401 = vmatmul.f32.gmra.mxu0 %v245
    %v402 = vpop.f32.mrf.mxu0
    %v403 = vadd.f32 %v380, %v402
    %404 = vmatmul.f32.gmra.mxu0 %v249
    %v405 = vpop.f32.mrf.mxu0
    %v406 = vadd.f32 %v383, %v405
    %407 = vdwg.mxu0
    %v408 = vadd.f32 %v250, %v403
    %v409 = vadd.f32 %v251, %v406
    %410 = vst [vmem:[#allocation2] sm:$0xff] %v408
    %411 = vst [vmem:[#allocation2 + $0x8] sm:$0xff] %v409
    // Predicated region
    $region38: #{feed_forward.1} parent=1 // pred_check
      %p412 = pneg %p68
    $region39: #{feed_forward.1} parent=1 // pred_check_branch
      %414 = sbr.rel (%p412) target = $region41
    $region40: #{feed_forward.1} parent=1 // pred_region
      %v415 = vld [vmem:[#allocation2] sm:$0xff]
      %v416 = vld [vmem:[#allocation2 + $0x8] sm:$0xff]
      %v417 = vld [vmem:[%s4] sm:$0x1]
      %v419 = vperm.slane %v417, 0
      %v421 = vadd.f32 %v415, %v419
      %v422 = vadd.f32 %v416, %v419
      %423 = vst [vmem:[#allocation9] sm:$0xff] %v421
      %424 = vst [vmem:[#allocation9 + $0x8] sm:$0xff] %v422
    $region41: #{feed_forward.1} parent=1 // pred_fallthru
      _
    // Predicated region
    $region42: #{feed_forward.1} parent=1 // pred_check
      _
    $region43: #{feed_forward.1} parent=1 // pred_check_branch
      %426 = sbr.rel (0) target = $region45
    $region44: #{feed_forward.1} parent=1 // pred_region
      %428 = vsyncadd [#allocation5], 0
      %s429 = sshll.u32 [#allocation9], 4
      %s430 = int_to_ptr.vmem [resolvable:$true] %s429
      %s431 = sshll.u32 %s5, 4
      %s432 = int_to_ptr.hbm [resolvable:$true] %s431
      %437 = dma.vmem_to_hbm [thread:$0]  %s430, 256, %s432, [#allocation5], 128, 128, 8
    $region45: #{feed_forward.1} parent=1 // pred_fallthru
      _
    // Predicated region
    $region46: #{feed_forward.1} parent=1 // pred_check
      _
    $region47: #{feed_forward.1} parent=1 // pred_check_branch
      %439 = sbr.rel (0) target = $region49
    $region48: #{feed_forward.1} parent=1 // pred_region
      %441 = dma.done [#allocation5], 256
    $region49: #{feed_forward.1} parent=1 // pred_fallthru
      _
    %442 = vsyncpa [#allocation4], 1
    %443 = vsyncpa [#allocation7], 1
    %444 = vsyncpa [#allocation5], 1

</llo_original>
